<compile_context>
chip_gen: v7x
topology: tpu7x:2x2x1
jax: 0.10.0
libtpu: 0.0.40
codegen_flags: <defaults>
</compile_context>

<pallas_src>
import jax
import jax.numpy as jnp
from jax.experimental import pallas as pl
from jax.experimental.pallas import tpu as pltpu

_MIB = 1024 * 1024
_TM_CANDIDATES = (1024, 768, 512, 384, 256, 128)
_TH_CANDIDATES = (1024, 512, 256, 128)


def _round_up(x, m):
    return (x + m - 1) // m * m


def _vmem_capacity_bytes():
    """Physical VMEM per TensorCore; conservative fallback if query fails."""
    try:
        cap = getattr(pltpu.get_tpu_info(), "vmem_capacity_bytes", None)
        if cap:
            return int(cap)
    except Exception:
        pass
    return 64 * _MIB  # v7x per-TC floor; safe on v5e/v6e too


def _choose_tm(M):
    """Token tile + padded M.  Prefers large, evenly dividing tiles; otherwise
    pads M to a sublane/tile-friendly multiple instead of a full-extent tile."""
    for c in _TM_CANDIDATES:
        if c <= M and M % c == 0:
            return c, M
    if M <= 1024:
        m_pad = _round_up(M, 8)
        return m_pad, m_pad
    m_pad = _round_up(M, 256)
    for c in _TM_CANDIDATES:
        if m_pad % c == 0:
            return c, m_pad
    return 256, m_pad


def _pick_th(H):
    for c in _TH_CANDIDATES:
        if c <= H and H % c == 0:
            return c
    return H  # full extent is always layout-legal


def _fast_est(tm, C, H, out_bytes):
    """VMEM footprint of the weights-resident path (double buffers included)."""
    return (2 * 2 * (C * H + H * C)          # bf16 W1+W2 (2x buffered alloc)
            + 2 * 4 * (8 * H + 8 * C)        # f32 biases, sublane padded, 2x
            + 2 * tm * C * 2                 # bf16 x tiles, 2x
            + 2 * tm * C * out_bytes         # out tiles, 2x
            + tm * H * (4 + 2))              # fc1 intermediate (f32 + bf16 cast)


def _tiled_est(tm, th, C, out_bytes):
    """VMEM footprint of the H-tiled reduction path."""
    return (2 * 2 * (C * th + th * C)        # bf16 W1/W2 slabs, 2x buffered
            + 2 * 4 * (8 * th + 8 * C)       # biases
            + 2 * tm * C * 2                 # bf16 x tiles
            + 2 * tm * C * out_bytes         # out tiles
            + tm * C * 4                     # resident f32 accumulator
            + tm * th * (4 + 2))             # fc1 intermediate (f32 + bf16 cast)


def _mlp_resident_kernel(x_ref, w1_ref, b1_ref, w2_ref, b2_ref, o_ref):
    # x_ref: (TM, C) bf16 | w1_ref: (C, H) bf16 | b1_ref: (1, H) f32
    # w2_ref: (H, C) bf16 | b2_ref: (1, C) f32  | o_ref: (TM, C)
    h = jnp.dot(x_ref[...], w1_ref[...], preferred_element_type=jnp.float32)
    h = h + b1_ref[...]                           # f32 bias add (VPU)
    h = jax.nn.gelu(h, approximate=True)          # tanh GELU -> EUP slot
    out = jnp.dot(h.astype(jnp.bfloat16), w2_ref[...],
                  preferred_element_type=jnp.float32)
    o_ref[...] = (out + b2_ref[...]).astype(o_ref.dtype)


def _mlp_tiled_kernel(x_ref, w1_ref, b1_ref, w2_ref, b2_ref, o_ref, acc_ref):
    # x_ref: (TM, C) bf16 | w1_ref: (C, TH) bf16 | b1_ref: (1, TH) f32
    # w2_ref: (TH, C) bf16 | b2_ref: (1, C) f32  | acc_ref: (TM, C) f32 resident
    k = pl.program_id(1)

    @pl.when(k == 0)
    def _init():
        # Fold the fc2 bias into the accumulator init.
        acc_ref[...] = jnp.broadcast_to(b2_ref[...], acc_ref.shape)

    h = jnp.dot(x_ref[...], w1_ref[...], preferred_element_type=jnp.float32)
    h = h + b1_ref[...]
    h = jax.nn.gelu(h, approximate=True)
    acc_ref[...] += jnp.dot(h.astype(jnp.bfloat16), w2_ref[...],
                            preferred_element_type=jnp.float32)

    @pl.when(k == pl.num_programs(1) - 1)
    def _finalize():
        o_ref[...] = acc_ref[...].astype(o_ref.dtype)


def mlp_pallas(x, w1, b1, w2, b2, *, tm=None, th=None, force_tiled=False):
    """x: (B, N, C). w1: (C, H), b1: (H,), w2: (H, C), b2: (C,). Returns (B, N, C)."""
    B, N, C = x.shape
    H = w1.shape[1]
    M = B * N
    out_dtype = x.dtype
    out_bytes = x.dtype.itemsize

    cap = _vmem_capacity_bytes()
    budget = int(cap * 0.70)      # tile-selection budget; leaves headroom so
                                  # vmem_limit (est*1.25) stays under 0.9*cap

    if tm is None:
        tm, m_pad = _choose_tm(M)
    else:
        m_pad = _round_up(M, tm)

    # --- decide between the weights-resident fast path and the tiled path ---
    use_fast = (not force_tiled) and (th is None)
    tm_fast = tm
    if use_fast:
        while _fast_est(tm_fast, C, H, out_bytes) > budget:
            if (tm_fast % 2 == 0 and tm_fast // 2 >= 256
                    and m_pad % (tm_fast // 2) == 0):
                tm_fast //= 2     # weights are resident: shrinking tm costs
                                  # nothing on the weight-DMA roofline
            else:
                use_fast = False
                break

    # --- operand prep --------------------------------------------------------
    x2d = x.reshape(M, C).astype(jnp.bfloat16)     # pre-cast: halves x DMA/VMEM
    if m_pad != M:
        x2d = jnp.pad(x2d, ((0, m_pad - M), (0, 0)))
    w1b = w1.astype(jnp.bfloat16)
    w2b = w2.astype(jnp.bfloat16)
    b1_2d = b1.reshape(1, H).astype(jnp.float32)
    b2_2d = b2.reshape(1, C).astype(jnp.float32)

    if use_fast:
        tm = tm_fast
        est = _fast_est(tm, C, H, out_bytes)
        vmem_limit = int(min(max(int(est * 1.25) + 4 * _MIB, 32 * _MIB),
                             int(cap * 0.90)))
        # TODO(synk): pipeline_mode=pl.Buffered(1) on the resident weight/bias
        #             specs would reclaim the dead second buffer on v7x; kept
        #             at the default for compile robustness.
        out = pl.pallas_call(
            _mlp_resident_kernel,
            out_shape=jax.ShapeDtypeStruct((m_pad, C), out_dtype),
            grid_spec=pltpu.PrefetchScalarGridSpec(
                num_scalar_prefetch=0,
                grid=(m_pad // tm,),
                in_specs=[
                    pl.BlockSpec((tm, C), lambda i: (i, 0)),   # x tile
                    pl.BlockSpec((C, H), lambda i: (0, 0)),    # W1 (resident)
                    pl.BlockSpec((1, H), lambda i: (0, 0)),    # b1 (resident)
                    pl.BlockSpec((H, C), lambda i: (0, 0)),    # W2 (resident)
                    pl.BlockSpec((1, C), lambda i: (0, 0)),    # b2 (resident)
                ],
                out_specs=pl.BlockSpec((tm, C), lambda i: (i, 0)),
            ),
            compiler_params=pltpu.CompilerParams(
                dimension_semantics=("parallel",),
                vmem_limit_bytes=vmem_limit,
            ),
        )(x2d, w1b, b1_2d, w2b, b2_2d)
    else:
        if th is None:
            th = _pick_th(H)
        # Shrink (th first, then tm) until the footprint fits the budget.
        while _tiled_est(tm, th, C, out_bytes) > budget:
            if th > 256 and th % 2 == 0 and H % (th // 2) == 0:
                th //= 2
            elif tm % 2 == 0 and tm // 2 >= 128 and m_pad % (tm // 2) == 0:
                tm //= 2
            else:
                break
        est = _tiled_est(tm, th, C, out_bytes)
        vmem_limit = int(min(max(int(est * 1.25) + 4 * _MIB, 32 * _MIB),
                             int(cap * 0.90)))
        out = pl.pallas_call(
            _mlp_tiled_kernel,
            out_shape=jax.ShapeDtypeStruct((m_pad, C), out_dtype),
            grid_spec=pltpu.PrefetchScalarGridSpec(
                num_scalar_prefetch=0,
                grid=(m_pad // tm, H // th),
                in_specs=[
                    pl.BlockSpec((tm, C), lambda i, k: (i, 0)),   # x (const over k)
                    pl.BlockSpec((C, th), lambda i, k: (0, k)),   # W1 H-slab
                    pl.BlockSpec((1, th), lambda i, k: (0, k)),   # b1 H-slab
                    pl.BlockSpec((th, C), lambda i, k: (k, 0)),   # W2 H-slab
                    pl.BlockSpec((1, C), lambda i, k: (0, 0)),    # b2 (resident)
                ],
                out_specs=pl.BlockSpec((tm, C), lambda i, k: (i, 0)),
                scratch_shapes=[pltpu.VMEM((tm, C), jnp.float32)],
            ),
            compiler_params=pltpu.CompilerParams(
                dimension_semantics=("parallel", "arbitrary"),
                vmem_limit_bytes=vmem_limit,
            ),
        )(x2d, w1b, b1_2d, w2b, b2_2d)

    return out[:M].reshape(B, N, C)


def mlp_ref(x, w1, b1, w2, b2):
    # f32 reference with exact-erf GELU (torch.nn.GELU default semantics).
    h = jax.nn.gelu(x @ w1 + b1, approximate=False)
    return h @ w2 + b2


def _make_inputs(key, B, N, C, H):
    kx, kw1, kw2 = jax.random.split(key, 3)
    x = jax.random.normal(kx, (B, N, C), dtype=jnp.float32)
    w1 = jax.random.normal(kw1, (C, H), dtype=jnp.float32) * 0.02
    b1 = jnp.zeros((H,), dtype=jnp.float32)
    w2 = jax.random.normal(kw2, (H, C), dtype=jnp.float32) * 0.02
    b2 = jnp.zeros((C,), dtype=jnp.float32)
    return x, w1, b1, w2, b2


if __name__ == "__main__":
    key = jax.random.PRNGKey(0)
    k1, k2, k3 = jax.random.split(key, 3)

    # --- small shapes consistent with a transformer-backbone Mlp -------------
    # (exercises the weights-resident fast path, grid = (1,))
    B, N, C, H = 2, 8, 32, 64          # hidden_features = 2 * in_features
    x, w1, b1, w2, b2 = _make_inputs(k1, B, N, C, H)
    y = jax.block_until_ready(mlp_pallas(x, w1, b1, w2, b2))
    y_ref = mlp_ref(x, w1, b1, w2, b2)
    assert y.shape == (B, N, C)
    # bf16 MXU operands + tanh-GELU vs f32/erf ref => relaxed tolerance.
    assert jnp.allclose(y, y_ref, atol=2e-2, rtol=2e-2), "mismatch (fast path)"

    # --- tiled reduction path + M padding (M = 1200 -> padded to 1280) -------
    B2, N2, C2, H2 = 2, 600, 128, 512
    x2, w1_2, b1_2, w2_2, b2_2 = _make_inputs(k2, B2, N2, C2, H2)
    y2 = jax.block_until_ready(
        mlp_pallas(x2, w1_2, b1_2, w2_2, b2_2, th=256, force_tiled=True))
    y2_ref = mlp_ref(x2, w1_2, b1_2, w2_2, b2_2)
    assert y2.shape == (B2, N2, C2)
    assert jnp.allclose(y2, y2_ref, atol=2e-2, rtol=2e-2), "mismatch (tiled path)"

    # --- fast path with multiple token tiles (M = 2048, tm = 1024) -----------
    B3, N3, C3, H3 = 2, 1024, 64, 256
    x3, w1_3, b1_3, w2_3, b2_3 = _make_inputs(k3, B3, N3, C3, H3)
    y3 = jax.block_until_ready(mlp_pallas(x3, w1_3, b1_3, w2_3, b2_3))
    y3_ref = mlp_ref(x3, w1_3, b1_3, w2_3, b2_3)
    assert y3.shape == (B3, N3, C3)
    assert jnp.allclose(y3, y3_ref, atol=2e-2, rtol=2e-2), "mismatch (fast multi-tile)"

    print("KERNEL_OK")
</pallas_src>

<mosaic_0001>
module attributes {stable_mosaic.version = 11 : i64} {
  func.func @_mlp_resident_kernel(%arg0: i32, %arg1: memref<16x32xbf16, #tpu.memory_space<vmem>>, %arg2: memref<32x64xbf16, #tpu.memory_space<vmem>>, %arg3: memref<1x64xf32, #tpu.memory_space<vmem>>, %arg4: memref<64x32xbf16, #tpu.memory_space<vmem>>, %arg5: memref<1x32xf32, #tpu.memory_space<vmem>>, %arg6: memref<16x32xf32, #tpu.memory_space<vmem>>) attributes {dimension_semantics = [#tpu.dimension_semantics<parallel>], iteration_bounds = array<i64: 1>, scalar_prefetch = 0 : i64, scratch_operands = 0 : i64, tpu.core_type = #tpu.core_type<tc>, window_params = [{transform_indices = @transform_0, window_bounds = array<i64: 16, 32>}, {pipeline_mode = #tpu.pipeline_mode<synchronous>, transform_indices = @transform_1, window_bounds = array<i64: 32, 64>}, {pipeline_mode = #tpu.pipeline_mode<synchronous>, transform_indices = @transform_2, window_bounds = array<i64: 1, 64>}, {pipeline_mode = #tpu.pipeline_mode<synchronous>, transform_indices = @transform_3, window_bounds = array<i64: 64, 32>}, {pipeline_mode = #tpu.pipeline_mode<synchronous>, transform_indices = @transform_4, window_bounds = array<i64: 1, 32>}, {transform_indices = @transform_5, window_bounds = array<i64: 16, 32>}]} {
    %c0 = arith.constant 0 : index
    %c0_0 = arith.constant 0 : index
    %0 = vector.load %arg1[%c0, %c0_0] : memref<16x32xbf16, #tpu.memory_space<vmem>>, vector<16x32xbf16>
    %c0_1 = arith.constant 0 : index
    %c0_2 = arith.constant 0 : index
    %1 = vector.load %arg2[%c0_1, %c0_2] : memref<32x64xbf16, #tpu.memory_space<vmem>>, vector<32x64xbf16>
    %cst = arith.constant dense<0.000000e+00> : vector<16x64xf32>
    %2 = tpu.matmul %0, %1, %cst {dimension_numbers = #tpu.dot_dimension_numbers<[1], [0], [0], [1], [0, 0, 1, 1], [], []>} : vector<16x32xbf16>, vector<32x64xbf16>, vector<16x64xf32> -> vector<16x64xf32>
    %c0_3 = arith.constant 0 : index
    %c0_4 = arith.constant 0 : index
    %3 = vector.load %arg3[%c0_3, %c0_4] : memref<1x64xf32, #tpu.memory_space<vmem>>, vector<1x64xf32>
    %4 = vector.broadcast %3 : vector<1x64xf32> to vector<16x64xf32>
    %5 = arith.addf %2, %4 : vector<16x64xf32>
    %6 = arith.mulf %5, %5 : vector<16x64xf32>
    %7 = arith.mulf %5, %6 : vector<16x64xf32>
    %cst_5 = arith.constant 4.471500e-02 : f32
    %8 = vector.broadcast %cst_5 : f32 to vector<16x64xf32>
    %9 = arith.mulf %8, %7 : vector<16x64xf32>
    %10 = arith.addf %5, %9 : vector<16x64xf32>
    %cst_6 = arith.constant 0.797884583 : f32
    %11 = vector.broadcast %cst_6 : f32 to vector<16x64xf32>
    %12 = arith.mulf %11, %10 : vector<16x64xf32>
    %13 = math.tanh %12 : vector<16x64xf32>
    %cst_7 = arith.constant 1.000000e+00 : f32
    %14 = vector.broadcast %cst_7 : f32 to vector<16x64xf32>
    %15 = arith.addf %14, %13 : vector<16x64xf32>
    %cst_8 = arith.constant 5.000000e-01 : f32
    %16 = vector.broadcast %cst_8 : f32 to vector<16x64xf32>
    %17 = arith.mulf %16, %15 : vector<16x64xf32>
    %18 = arith.mulf %5, %17 : vector<16x64xf32>
    %19 = arith.truncf %18 : vector<16x64xf32> to vector<16x64xbf16>
    %c0_9 = arith.constant 0 : index
    %c0_10 = arith.constant 0 : index
    %20 = vector.load %arg4[%c0_9, %c0_10] : memref<64x32xbf16, #tpu.memory_space<vmem>>, vector<64x32xbf16>
    %cst_11 = arith.constant dense<0.000000e+00> : vector<16x32xf32>
    %21 = tpu.matmul %19, %20, %cst_11 {dimension_numbers = #tpu.dot_dimension_numbers<[1], [0], [0], [1], [0, 0, 1, 1], [], []>} : vector<16x64xbf16>, vector<64x32xbf16>, vector<16x32xf32> -> vector<16x32xf32>
    %c0_12 = arith.constant 0 : index
    %c0_13 = arith.constant 0 : index
    %22 = vector.load %arg5[%c0_12, %c0_13] : memref<1x32xf32, #tpu.memory_space<vmem>>, vector<1x32xf32>
    %23 = vector.broadcast %22 : vector<1x32xf32> to vector<16x32xf32>
    %24 = arith.addf %21, %23 : vector<16x32xf32>
    %c0_14 = arith.constant 0 : index
    %c0_15 = arith.constant 0 : index
    %25 = vector.load %arg6[%c0_14, %c0_15] : memref<16x32xf32, #tpu.memory_space<vmem>>, vector<16x32xf32>
    tpu.vector_store %arg6[%c0_14, %c0_15], %24 {strides = array<i32>} : memref<16x32xf32, #tpu.memory_space<vmem>>, vector<16x32xf32>,
    return
  }
  func.func @transform_0(%arg0: i32) -> (i32, i32) {
    %c0_i32 = arith.constant 0 : i32
    %c0_i32_0 = arith.constant 0 : i32
    return %arg0, %c0_i32 : i32, i32
  }
  func.func @transform_1(%arg0: i32) -> (i32, i32) {
    %c0_i32 = arith.constant 0 : i32
    %c0_i32_0 = arith.constant 0 : i32
    %c0_i32_1 = arith.constant 0 : i32
    return %c0_i32, %c0_i32_0 : i32, i32
  }
  func.func @transform_2(%arg0: i32) -> (i32, i32) {
    %c0_i32 = arith.constant 0 : i32
    %c0_i32_0 = arith.constant 0 : i32
    %c0_i32_1 = arith.constant 0 : i32
    return %c0_i32, %c0_i32_0 : i32, i32
  }
  func.func @transform_3(%arg0: i32) -> (i32, i32) {
    %c0_i32 = arith.constant 0 : i32
    %c0_i32_0 = arith.constant 0 : i32
    %c0_i32_1 = arith.constant 0 : i32
    return %c0_i32, %c0_i32_0 : i32, i32
  }
  func.func @transform_4(%arg0: i32) -> (i32, i32) {
    %c0_i32 = arith.constant 0 : i32
    %c0_i32_0 = arith.constant 0 : i32
    %c0_i32_1 = arith.constant 0 : i32
    return %c0_i32, %c0_i32_0 : i32, i32
  }
  func.func @transform_5(%arg0: i32) -> (i32, i32) {
    %c0_i32 = arith.constant 0 : i32
    %c0_i32_0 = arith.constant 0 : i32
    return %arg0, %c0_i32 : i32, i32
  }
}

</mosaic_0001>

<llo_original>
// kernel: tpu_custom_call.1
$region0: #{tpu_custom_call.1}
  #allocation0 [shape = 'u32[]', space=smem, size = 0x4, offset = 0x4, fixed_abs, tag = 'smem constant byte address 0x4 - core index']
  #allocation1 [shape = 'u32[144,128]{1,0:T(1,128)}', space=vmem, size = 0x12000, scoped, tag = 'internal scratch']
  %s0 = inlined_call_operand.vmem [shape: bf16[16,32], index: 0, kind: input, shape index: {}]
  %s1 = inlined_call_operand.vmem [shape: bf16[32,64], index: 1, kind: input, shape index: {}]
  %s2 = inlined_call_operand.vmem [shape: f32[1,64], index: 2, kind: input, shape index: {}]
  %s3 = inlined_call_operand.vmem [shape: bf16[64,32], index: 3, kind: input, shape index: {}]
  %s4 = inlined_call_operand.vmem [shape: f32[1,32], index: 4, kind: input, shape index: {}]
  %s5 = inlined_call_operand.hbm [shape: f32[16,32], index: 5, kind: output, shape index: {}]
  %s6 = sld [smem:[#allocation0]]
  $region30: #{tpu_custom_call.1} parent=0
    _
  %s8 = ssub.s32 1, %s6
  %s9 = scalar_select 0, %s8, %s6
  $region1: #{tpu_custom_call.1} parent=0
    #allocation2 [shape = 'u8[8192]{0}', space=vmem, size = 0x2000, scoped, tag = 'output window, operand 0, single buffered']
    #allocation3 [shape = 's32[1]{0}', space=sflag, size = 0x4, scoped, tag = 'scoped memory for tpu_custom_call.1']
    %10 = vsyncpa [#allocation3], 0
    // Predicated region
    $region2: #{tpu_custom_call.1} parent=1 // pred_check
      _
    $region3: #{tpu_custom_call.1} parent=1 // pred_check_branch
      %12 = sbr.rel (0) target = $region5
    $region4: #{tpu_custom_call.1} parent=1 // pred_region
      _
    $region5: #{tpu_custom_call.1} parent=1 // pred_fallthru
      _
    // Predicated region
    $region6: #{tpu_custom_call.1} parent=1 // pred_check
      _
    $region7: #{tpu_custom_call.1} parent=1 // pred_check_branch
      %14 = sbr.rel (0) target = $region9
    $region8: #{tpu_custom_call.1} parent=1 // pred_region
      _
    $region9: #{tpu_custom_call.1} parent=1 // pred_fallthru
      _
    // Predicated region
    $region10: #{tpu_custom_call.1} parent=1 // pred_check
      _
    $region11: #{tpu_custom_call.1} parent=1 // pred_check_branch
      %16 = sbr.rel (0) target = $region13
    $region12: #{tpu_custom_call.1} parent=1 // pred_region
      _
    $region13: #{tpu_custom_call.1} parent=1 // pred_fallthru
      _
    // Predicated region
    $region14: #{tpu_custom_call.1} parent=1 // pred_check
      _
    $region15: #{tpu_custom_call.1} parent=1 // pred_check_branch
      %18 = sbr.rel (0) target = $region17
    $region16: #{tpu_custom_call.1} parent=1 // pred_region
      _
    $region17: #{tpu_custom_call.1} parent=1 // pred_fallthru
      _
    // Predicated region
    $region18: #{tpu_custom_call.1} parent=1 // pred_check
      _
    $region19: #{tpu_custom_call.1} parent=1 // pred_check_branch
      %20 = sbr.rel (0) target = $region21
    $region20: #{tpu_custom_call.1} parent=1 // pred_region
      _
    $region21: #{tpu_custom_call.1} parent=1 // pred_fallthru
      _
    %v22 = vld [vmem:[%s0] sm:$0xf]
    %v23 = vld [vmem:[%s0 + $0x4] sm:$0xf]
    %v24 = vld [vmem:[%s1] sm:$0xf]
    %v25 = vld [vmem:[%s1 + $0x4] sm:$0xf]
    %v26 = vld [vmem:[%s1 + $0x8] sm:$0xf]
    %v27 = vld [vmem:[%s1 + $0xc] sm:$0xf]
    %v28 = vld [vmem:[%s2] sm:$0x1]
    %v30 = vlaneseq
    %v31 = vshrl.u32 %v30, 7
    %v32 = vsub.s32 0, %v31
    %v33 = vrot.slane %v28, %v32
    %v37 = vunpack.c.l.b16 %v22
    %v38 = vunpack.c.l.b16 %v23
    %v39 = vpack.c.b16 %v38, %v37
    %v44 = vunpack.c.l.b16 %v24
    %v45 = vunpack.c.l.b16 %v25
    %v46 = vunpack.c.l.b16 %v26
    %v47 = vunpack.c.l.b16 %v27
    %v48 = vpack.c.b16 %v45, %v44
    %v49 = vpack.c.b16 %v47, %v46
    %vm52 = vcmask 261120
    %v54 = vsel %vm52, %v39, 0
    %56 = vmatprep.subr.bf16.mxu0 0
    %57 = vmatpush1.bf16.msra.mxu0 %v48
    %58 = vmatprep.subr.bf16.mxu0 0
    %59 = vmatpush1.bf16.msra.mxu0 %v49
    %60 = vmatprep.subr.bf16.mxu0 0
    %61 = vmatpush1.bf16.msra.mxu0 0
    %62 = vmatprep.subr.bf16.mxu0 0
    %63 = vmatpush1.bf16.msra.mxu0 0
    %64 = vmatprep.subr.bf16.mxu0 0
    %65 = vmatpush1.bf16.msra.mxu0 0
    %66 = vmatprep.subr.bf16.mxu0 0
    %67 = vmatpush1.bf16.msra.mxu0 0
    %68 = vmatprep.subr.bf16.mxu0 0
    %69 = vmatpush1.bf16.msra.mxu0 0
    %70 = vmatprep.subr.bf16.mxu0 0
    %71 = vmatpush1.bf16.msra.mxu0 0
    %72 = vmatprep.subr.bf16.mxu0 0
    %73 = vmatpush1.bf16.msra.mxu0 0
    %74 = vmatprep.subr.bf16.mxu0 0
    %75 = vmatpush1.bf16.msra.mxu0 0
    %76 = vmatprep.subr.bf16.mxu0 0
    %77 = vmatpush1.bf16.msra.mxu0 0
    %78 = vmatprep.subr.bf16.mxu0 0
    %79 = vmatpush1.bf16.msra.mxu0 0
    %80 = vmatprep.subr.bf16.mxu0 0
    %81 = vmatpush1.bf16.msra.mxu0 0
    %82 = vmatprep.subr.bf16.mxu0 0
    %83 = vmatpush1.bf16.msra.mxu0 0
    %84 = vmatprep.subr.bf16.mxu0 0
    %85 = vmatpush1.bf16.msra.mxu0 0
    %86 = vmatprep.subr.bf16.mxu0 0
    %87 = vmatpush1.bf16.msra.mxu0 0
    %88 = vmatprep.mubr.bf16.mxu0 0
    %89 = vmatmul.mubr.bf16.gmra.mrb[0].mxu0 %v54
    %v90 = vpop.f32.mrb[0].mxu0
    %v91 = vadd.f32 %v33, %v90
    %v92 = vpop.f32.mrb[0].mxu0
    %v93 = vpop.f32.mrb[0].mxu0
    %v94 = vadd.f32 %v33, %v93
    %v95 = vpop.f32.mrb[0].mxu0
    %96 = vdwg.mxu0
    %v97 = vmul.f32 %v91, %v91
    %v98 = vmul.f32 %v94, %v94
    %v99 = vmul.f32 %v91, %v97
    %v100 = vmul.f32 %v94, %v98
    %v101 = vmul.f32 %v99, 0.044715
    %v102 = vmul.f32 %v100, 0.044715
    %v103 = vadd.f32 %v91, %v101
    %v104 = vadd.f32 %v94, %v102
    %v105 = vmul.f32 %v103, 0.7978846
    %v106 = vmul.f32 %v104, 0.7978846
    %v107 = vtanh.pop %v105
    %v108 = vtanh.pop %v106
    %v109 = vadd.f32 %v107, 1.0
    %v110 = vadd.f32 %v108, 1.0
    %v111 = vmul.f32 %v109, 0.5
    %v112 = vmul.f32 %v110, 0.5
    %v113 = vmul.f32 %v91, %v111
    %v114 = vmul.f32 %v94, %v112
    %v115 = vpack.c.bf16 %v114, %v113
    %v116 = vld [vmem:[%s3] sm:$0xf]
    %v117 = vld [vmem:[%s3 + $0x4] sm:$0xf]
    %v118 = vld [vmem:[%s3 + $0x8] sm:$0xf]
    %v119 = vld [vmem:[%s3 + $0xc] sm:$0xf]
    %v120 = vld [vmem:[%s3 + $0x10] sm:$0xf]
    %v121 = vld [vmem:[%s3 + $0x14] sm:$0xf]
    %v122 = vld [vmem:[%s3 + $0x18] sm:$0xf]
    %v123 = vld [vmem:[%s3 + $0x1c] sm:$0xf]
    %v124 = vld [vmem:[%s4] sm:$0x1]
    %v126 = vlaneseq
    %v127 = vshrl.u32 %v126, 7
    %v128 = vsub.s32 0, %v127
    %v129 = vrot.slane %v124, %v128
    %v139 = vunpack.c.l.b16 %v116
    %v140 = vunpack.c.l.b16 %v117
    %v141 = vunpack.c.l.b16 %v118
    %v142 = vunpack.c.l.b16 %v119
    %v143 = vunpack.c.l.b16 %v120
    %v144 = vunpack.c.l.b16 %v121
    %v145 = vunpack.c.l.b16 %v122
    %v146 = vunpack.c.l.b16 %v123
    %v147 = vpack.c.b16 %v140, %v139
    %v148 = vpack.c.b16 %v142, %v141
    %v149 = vpack.c.b16 %v144, %v143
    %v150 = vpack.c.b16 %v146, %v145
    %vm155 = vcmask 523264
    %v157 = vsel %vm155, %v115, 0
    %159 = vmatprep.subr.bf16.mxu0 0
    %160 = vmatpush1.bf16.msra.mxu0 %v147
    %161 = vmatprep.subr.bf16.mxu0 0
    %162 = vmatpush1.bf16.msra.mxu0 %v148
    %163 = vmatprep.subr.bf16.mxu0 0
    %164 = vmatpush1.bf16.msra.mxu0 %v149
    %165 = vmatprep.subr.bf16.mxu0 0
    %166 = vmatpush1.bf16.msra.mxu0 %v150
    %167 = vmatprep.subr.bf16.mxu0 0
    %168 = vmatpush1.bf16.msra.mxu0 0
    %169 = vmatprep.subr.bf16.mxu0 0
    %170 = vmatpush1.bf16.msra.mxu0 0
    %171 = vmatprep.subr.bf16.mxu0 0
    %172 = vmatpush1.bf16.msra.mxu0 0
    %173 = vmatprep.subr.bf16.mxu0 0
    %174 = vmatpush1.bf16.msra.mxu0 0
    %175 = vmatprep.subr.bf16.mxu0 0
    %176 = vmatpush1.bf16.msra.mxu0 0
    %177 = vmatprep.subr.bf16.mxu0 0
    %178 = vmatpush1.bf16.msra.mxu0 0
    %179 = vmatprep.subr.bf16.mxu0 0
    %180 = vmatpush1.bf16.msra.mxu0 0
    %181 = vmatprep.subr.bf16.mxu0 0
    %182 = vmatpush1.bf16.msra.mxu0 0
    %183 = vmatprep.subr.bf16.mxu0 0
    %184 = vmatpush1.bf16.msra.mxu0 0
    %185 = vmatprep.subr.bf16.mxu0 0
    %186 = vmatpush1.bf16.msra.mxu0 0
    %187 = vmatprep.subr.bf16.mxu0 0
    %188 = vmatpush1.bf16.msra.mxu0 0
    %189 = vmatprep.subr.bf16.mxu0 0
    %190 = vmatpush1.bf16.msra.mxu0 0
    %191 = vmatprep.mubr.bf16.mxu0 0
    %192 = vmatmul.mubr.bf16.gmra.mrb[0].mxu0 %v157
    %v193 = vpop.f32.mrb[0].mxu0
    %v194 = vadd.f32 %v129, %v193
    %v195 = vpop.f32.mrb[0].mxu0
    %v196 = vpop.f32.mrb[0].mxu0
    %v197 = vadd.f32 %v129, %v196
    %v198 = vpop.f32.mrb[0].mxu0
    %199 = vdwg.mxu0
    %200 = vst.msk [vmem:[#allocation2] sm:$0xff] %vm52, %v194
    %201 = vst.msk [vmem:[#allocation2 + $0x8] sm:$0xff] %vm52, %v197
    // Predicated region
    $region22: #{tpu_custom_call.1} parent=1 // pred_check
      _
    $region23: #{tpu_custom_call.1} parent=1 // pred_check_branch
      %203 = sbr.rel (0) target = $region25
    $region24: #{tpu_custom_call.1} parent=1 // pred_region
      %s205 = ssub.s32 256, 256
      %206 = vsyncadd [#allocation3], %s205
      %s207 = sshll.u32 [#allocation2], 4
      %s208 = int_to_ptr.vmem [resolvable:$true] %s207
      %213 = dma.vmem_to_hbm [thread:$0]  %s208, 256, %s5, [#allocation3], 128, 128, 8
    $region25: #{tpu_custom_call.1} parent=1 // pred_fallthru
      _
    // Predicated region
    $region26: #{tpu_custom_call.1} parent=1 // pred_check
      _
    $region27: #{tpu_custom_call.1} parent=1 // pred_check_branch
      %215 = sbr.rel (0) target = $region29
    $region28: #{tpu_custom_call.1} parent=1 // pred_region
      %216 = dma.done [#allocation3], 256
    $region29: #{tpu_custom_call.1} parent=1 // pred_fallthru
      _
    %217 = vsyncpa [#allocation3], 1

</llo_original>
